<compile_context>
chip_gen: v5e
topology: v5e:2x2
jax: 0.10.0
libtpu: 0.0.40
codegen_flags: <defaults>
</compile_context>

<pallas_src>
import functools

import jax
import jax.numpy as jnp
from jax.experimental import pallas as pl
from jax.experimental.pallas import tpu as pltpu


LANE = 128  # native lane width


def _round_up(n, m):
    return ((n + m - 1) // m) * m


def _pad_to(x, shape):
    pads = [(0, t - s) for s, t in zip(x.shape, shape)]
    return jnp.pad(x, pads)


def _choose_tb(B, block_batch, min_steps=8):
    """Batch tile: multiple of 8, aims for >= min_steps grid steps (megacore +
    pipelining on v7x), capped at block_batch to bound VMEM."""
    tb = _round_up(max(1, -(-B // min_steps)), 8)
    return max(8, min(block_batch, tb))


# ---------------------------------------------------------------------------
# Kernel
# ---------------------------------------------------------------------------
def qnet_kernel(x_ref, w1_ref, b1_ref, w2_ref, b2_ref, w3_ref, b3_ref, out_ref):
    cdt = w1_ref.dtype  # compute (MXU input) dtype: f32 or bf16

    # cast the activation block in-kernel (no wrapper-side pad/cast pass)
    x = x_ref[...].astype(cdt)

    # fc1 + ReLU  (f32 accumulation / bias / ReLU)
    h1 = jnp.dot(x, w1_ref[...], preferred_element_type=jnp.float32)
    h1 = jnp.maximum(h1 + b1_ref[...], 0.0).astype(cdt)

    # fc2 + ReLU  (H2 left unpadded at 64)
    h2 = jnp.dot(h1, w2_ref[...], preferred_element_type=jnp.float32)
    h2 = jnp.maximum(h2 + b2_ref[...], 0.0).astype(cdt)

    # logits  (unpadded A-lane store; Pallas masks the narrow vst)
    h3 = jnp.dot(h2, w3_ref[...], preferred_element_type=jnp.float32)
    out_ref[...] = (h3 + b3_ref[...]).astype(out_ref.dtype)


# ---------------------------------------------------------------------------
# Param preparation (run once, outside the per-step forward)
# ---------------------------------------------------------------------------
def prepare_params(params, compute_dtype=jnp.bfloat16):
    """Pad / cast weights once.  Accepts biases of shape (H,) or (1, H).
    Weights are [in_features, out_features]."""
    w1, b1 = params["w1"], jnp.asarray(params["b1"]).reshape(1, -1)
    w2, b2 = params["w2"], jnp.asarray(params["b2"]).reshape(1, -1)
    w3, b3 = params["w3"], jnp.asarray(params["b3"]).reshape(1, -1)

    S, H1 = w1.shape
    H2 = w2.shape[1]
    A = w3.shape[1]
    H1p = _round_up(H1, LANE)  # no-op for fc1_units=128; exact zero padding

    return {
        "w1": _pad_to(w1, (S, H1p)).astype(compute_dtype),
        "b1": _pad_to(b1, (1, H1p)).astype(jnp.float32),
        "w2": _pad_to(w2, (H1p, H2)).astype(compute_dtype),
        "b2": b2.astype(jnp.float32),
        "w3": w3.astype(compute_dtype),
        "b3": b3.astype(jnp.float32),
    }


# ---------------------------------------------------------------------------
# Forward
# ---------------------------------------------------------------------------
@functools.partial(jax.jit, static_argnames=("block_batch",))
def qnetwork_forward(state, prep, block_batch=2048):
    """state: [B, state_size] float32.  prep: output of prepare_params().
    Returns [B, action_size] float32 Q-values."""
    w1, b1 = prep["w1"], prep["b1"]
    w2, b2 = prep["w2"], prep["b2"]
    w3, b3 = prep["w3"], prep["b3"]

    B, S = state.shape
    H1p = w1.shape[1]
    H2 = w2.shape[1]
    A = w3.shape[1]

    TB = _choose_tb(B, block_batch)
    grid = (pl.cdiv(B, TB),)

    const = lambda shape: pl.BlockSpec(shape, lambda i: (0, 0))
    w_item = jnp.dtype(w1.dtype).itemsize
    x_item = jnp.dtype(state.dtype).itemsize

    cost = pl.CostEstimate(
        flops=2 * B * (S * H1p + H1p * H2 + H2 * A),
        transcendentals=0,
        bytes_accessed=(B * S * x_item                                # state in
                        + B * A * 4                                   # logits out
                        + (S * H1p + H1p * H2 + H2 * A) * w_item      # weights
                        + (H1p + H2 + A) * 4),                        # biases
    )

    return pl.pallas_call(
        qnet_kernel,
        out_shape=jax.ShapeDtypeStruct((B, A), jnp.float32),
        grid=grid,
        in_specs=[
            pl.BlockSpec((TB, S), lambda i: (i, 0)),        # state (ragged last block masked)
            const((S, H1p)), const((1, H1p)),               # fc1
            const((H1p, H2)), const((1, H2)),               # fc2
            const((H2, A)), const((1, A)),                  # logits
        ],
        out_specs=pl.BlockSpec((TB, A), lambda i: (i, 0)),
        compiler_params=pltpu.CompilerParams(
            dimension_semantics=("parallel",),
        ),
        cost_estimate=cost,
    )(state, w1, b1, w2, b2, w3, b3)


# ---------------------------------------------------------------------------
# Param init (mimics PyTorch nn.Linear default init) + pure-JAX reference
# ---------------------------------------------------------------------------
def init_params(key, state_size, action_size, fc1_units=128, fc2_units=64):
    """PyTorch nn.Linear default init: U(-1/sqrt(fan_in), 1/sqrt(fan_in)).
    Weights stored as [in_features, out_features] (transposed vs. torch)."""
    def linear(k, fan_in, fan_out):
        kw, kb = jax.random.split(k)
        bound = 1.0 / jnp.sqrt(float(fan_in))
        w = jax.random.uniform(kw, (fan_in, fan_out), jnp.float32, -bound, bound)
        b = jax.random.uniform(kb, (fan_out,), jnp.float32, -bound, bound)
        return w, b

    k1, k2, k3 = jax.random.split(key, 3)
    w1, b1 = linear(k1, state_size, fc1_units)
    w2, b2 = linear(k2, fc1_units, fc2_units)
    w3, b3 = linear(k3, fc2_units, action_size)
    return {"w1": w1, "b1": b1, "w2": w2, "b2": b2, "w3": w3, "b3": b3}


def reference_forward(state, p):
    h1 = jnp.maximum(state @ p["w1"] + p["b1"].reshape(1, -1), 0.0)
    h2 = jnp.maximum(h1 @ p["w2"] + p["b2"].reshape(1, -1), 0.0)
    return h2 @ p["w3"] + p["b3"].reshape(1, -1)


if __name__ == "__main__":
    key = jax.random.PRNGKey(0)
    k_params, k_state1, k_state2 = jax.random.split(key, 3)

    state_size = 16
    action_size = 4
    params = init_params(k_params, state_size, action_size)

    prep_f32 = prepare_params(params, compute_dtype=jnp.float32)
    prep_bf16 = prepare_params(params, compute_dtype=jnp.bfloat16)

    # 1) small batch, f32 compute: must match the reference tightly.
    state = jax.random.normal(k_state1, (8, state_size), jnp.float32)
    out = jax.block_until_ready(qnetwork_forward(state, prep_f32))
    ref = reference_forward(state, params)
    assert out.shape == (8, action_size)
    assert jnp.allclose(out, ref, atol=1e-5, rtol=1e-5), "f32 mismatch vs reference"

    # 2) non-multiple-of-TB batch (exercises ragged last block masking), f32.
    state2 = jax.random.normal(k_state2, (50, state_size), jnp.float32)
    out2 = jax.block_until_ready(qnetwork_forward(state2, prep_f32))
    ref2 = reference_forward(state2, params)
    assert out2.shape == (50, action_size)
    assert jnp.allclose(out2, ref2, atol=1e-5, rtol=1e-5), "ragged-batch mismatch"

    # 3) bf16 weights/activations (default fast path on v6e/v7x), f32 accumulation.
    out_bf16 = jax.block_until_ready(qnetwork_forward(state, prep_bf16))
    assert out_bf16.shape == (8, action_size)
    assert jnp.allclose(out_bf16, ref, atol=5e-2, rtol=5e-2), "bf16 mismatch"

    print("KERNEL_OK")
</pallas_src>

<mosaic_0001>
module attributes {stable_mosaic.version = 11 : i64} {
  func.func @qnet_kernel(%arg0: i32, %arg1: memref<8x16xf32, #tpu.memory_space<vmem>>, %arg2: memref<16x128xf32, #tpu.memory_space<vmem>>, %arg3: memref<1x128xf32, #tpu.memory_space<vmem>>, %arg4: memref<128x64xf32, #tpu.memory_space<vmem>>, %arg5: memref<1x64xf32, #tpu.memory_space<vmem>>, %arg6: memref<64x4xf32, #tpu.memory_space<vmem>>, %arg7: memref<1x4xf32, #tpu.memory_space<vmem>>, %arg8: memref<8x4xf32, #tpu.memory_space<vmem>>) attributes {dimension_semantics = [#tpu.dimension_semantics<parallel>], iteration_bounds = array<i64: 1>, scalar_prefetch = 0 : i64, scratch_operands = 0 : i64, tpu.core_type = #tpu.core_type<tc>, window_params = [{transform_indices = @transform_0, window_bounds = array<i64: 8, 16>}, {pipeline_mode = #tpu.pipeline_mode<synchronous>, transform_indices = @transform_1, window_bounds = array<i64: 16, 128>}, {pipeline_mode = #tpu.pipeline_mode<synchronous>, transform_indices = @transform_2, window_bounds = array<i64: 1, 128>}, {pipeline_mode = #tpu.pipeline_mode<synchronous>, transform_indices = @transform_3, window_bounds = array<i64: 128, 64>}, {pipeline_mode = #tpu.pipeline_mode<synchronous>, transform_indices = @transform_4, window_bounds = array<i64: 1, 64>}, {pipeline_mode = #tpu.pipeline_mode<synchronous>, transform_indices = @transform_5, window_bounds = array<i64: 64, 4>}, {pipeline_mode = #tpu.pipeline_mode<synchronous>, transform_indices = @transform_6, window_bounds = array<i64: 1, 4>}, {transform_indices = @transform_7, window_bounds = array<i64: 8, 4>}]} {
    %c0 = arith.constant 0 : index
    %c0_0 = arith.constant 0 : index
    %0 = vector.load %arg1[%c0, %c0_0] : memref<8x16xf32, #tpu.memory_space<vmem>>, vector<8x16xf32>
    %c0_1 = arith.constant 0 : index
    %c0_2 = arith.constant 0 : index
    %1 = vector.load %arg2[%c0_1, %c0_2] : memref<16x128xf32, #tpu.memory_space<vmem>>, vector<16x128xf32>
    %cst = arith.constant dense<0.000000e+00> : vector<8x128xf32>
    %2 = tpu.matmul %0, %1, %cst {dimension_numbers = #tpu.dot_dimension_numbers<[1], [0], [0], [1], [0, 0, 1, 1], [], []>} : vector<8x16xf32>, vector<16x128xf32>, vector<8x128xf32> -> vector<8x128xf32>
    %c0_3 = arith.constant 0 : index
    %c0_4 = arith.constant 0 : index
    %3 = vector.load %arg3[%c0_3, %c0_4] : memref<1x128xf32, #tpu.memory_space<vmem>>, vector<1x128xf32>
    %4 = vector.broadcast %3 : vector<1x128xf32> to vector<8x128xf32>
    %5 = arith.addf %2, %4 : vector<8x128xf32>
    %cst_5 = arith.constant 0.000000e+00 : f32
    %6 = vector.broadcast %cst_5 : f32 to vector<8x128xf32>
    %7 = arith.maximumf %5, %6 : vector<8x128xf32>
    %c0_6 = arith.constant 0 : index
    %c0_7 = arith.constant 0 : index
    %8 = vector.load %arg4[%c0_6, %c0_7] : memref<128x64xf32, #tpu.memory_space<vmem>>, vector<128x64xf32>
    %cst_8 = arith.constant dense<0.000000e+00> : vector<8x64xf32>
    %9 = tpu.matmul %7, %8, %cst_8 {dimension_numbers = #tpu.dot_dimension_numbers<[1], [0], [0], [1], [0, 0, 1, 1], [], []>} : vector<8x128xf32>, vector<128x64xf32>, vector<8x64xf32> -> vector<8x64xf32>
    %c0_9 = arith.constant 0 : index
    %c0_10 = arith.constant 0 : index
    %10 = vector.load %arg5[%c0_9, %c0_10] : memref<1x64xf32, #tpu.memory_space<vmem>>, vector<1x64xf32>
    %11 = vector.broadcast %10 : vector<1x64xf32> to vector<8x64xf32>
    %12 = arith.addf %9, %11 : vector<8x64xf32>
    %cst_11 = arith.constant 0.000000e+00 : f32
    %13 = vector.broadcast %cst_11 : f32 to vector<8x64xf32>
    %14 = arith.maximumf %12, %13 : vector<8x64xf32>
    %c0_12 = arith.constant 0 : index
    %c0_13 = arith.constant 0 : index
    %15 = vector.load %arg6[%c0_12, %c0_13] : memref<64x4xf32, #tpu.memory_space<vmem>>, vector<64x4xf32>
    %cst_14 = arith.constant dense<0.000000e+00> : vector<8x4xf32>
    %16 = tpu.matmul %14, %15, %cst_14 {dimension_numbers = #tpu.dot_dimension_numbers<[1], [0], [0], [1], [0, 0, 1, 1], [], []>} : vector<8x64xf32>, vector<64x4xf32>, vector<8x4xf32> -> vector<8x4xf32>
    %c0_15 = arith.constant 0 : index
    %c0_16 = arith.constant 0 : index
    %17 = vector.load %arg7[%c0_15, %c0_16] : memref<1x4xf32, #tpu.memory_space<vmem>>, vector<1x4xf32>
    %18 = vector.broadcast %17 : vector<1x4xf32> to vector<8x4xf32>
    %19 = arith.addf %16, %18 : vector<8x4xf32>
    %c0_17 = arith.constant 0 : index
    %c0_18 = arith.constant 0 : index
    %20 = vector.load %arg8[%c0_17, %c0_18] : memref<8x4xf32, #tpu.memory_space<vmem>>, vector<8x4xf32>
    tpu.vector_store %arg8[%c0_17, %c0_18], %19 {strides = array<i32>} : memref<8x4xf32, #tpu.memory_space<vmem>>, vector<8x4xf32>,
    return
  }
  func.func @transform_0(%arg0: i32) -> (i32, i32) {
    %c0_i32 = arith.constant 0 : i32
    %c0_i32_0 = arith.constant 0 : i32
    return %arg0, %c0_i32 : i32, i32
  }
  func.func @transform_1(%arg0: i32) -> (i32, i32) {
    %c0_i32 = arith.constant 0 : i32
    %c0_i32_0 = arith.constant 0 : i32
    %c0_i32_1 = arith.constant 0 : i32
    return %c0_i32, %c0_i32_0 : i32, i32
  }
  func.func @transform_2(%arg0: i32) -> (i32, i32) {
    %c0_i32 = arith.constant 0 : i32
    %c0_i32_0 = arith.constant 0 : i32
    %c0_i32_1 = arith.constant 0 : i32
    return %c0_i32, %c0_i32_0 : i32, i32
  }
  func.func @transform_3(%arg0: i32) -> (i32, i32) {
    %c0_i32 = arith.constant 0 : i32
    %c0_i32_0 = arith.constant 0 : i32
    %c0_i32_1 = arith.constant 0 : i32
    return %c0_i32, %c0_i32_0 : i32, i32
  }
  func.func @transform_4(%arg0: i32) -> (i32, i32) {
    %c0_i32 = arith.constant 0 : i32
    %c0_i32_0 = arith.constant 0 : i32
    %c0_i32_1 = arith.constant 0 : i32
    return %c0_i32, %c0_i32_0 : i32, i32
  }
  func.func @transform_5(%arg0: i32) -> (i32, i32) {
    %c0_i32 = arith.constant 0 : i32
    %c0_i32_0 = arith.constant 0 : i32
    %c0_i32_1 = arith.constant 0 : i32
    return %c0_i32, %c0_i32_0 : i32, i32
  }
  func.func @transform_6(%arg0: i32) -> (i32, i32) {
    %c0_i32 = arith.constant 0 : i32
    %c0_i32_0 = arith.constant 0 : i32
    %c0_i32_1 = arith.constant 0 : i32
    return %c0_i32, %c0_i32_0 : i32, i32
  }
  func.func @transform_7(%arg0: i32) -> (i32, i32) {
    %c0_i32 = arith.constant 0 : i32
    %c0_i32_0 = arith.constant 0 : i32
    return %arg0, %c0_i32 : i32, i32
  }
}

</mosaic_0001>

<llo_original>
// kernel: qnetwork_forward.1
$region0: #{qnetwork_forward.1}
  #allocation0 [shape = 'u32[]', space=smem, size = 0x4, offset = 0x4, fixed_abs, tag = 'smem constant byte address 0x4 - core index']
  #allocation1 [shape = 'u32[72,128]{1,0:T(1,128)}', space=vmem, size = 0x9000, scoped, tag = 'internal scratch']
  %s0 = inlined_call_operand.vmem [shape: f32[8,16], index: 0, kind: input, shape index: {}]
  %s1 = inlined_call_operand.vmem [shape: f32[16,128], index: 1, kind: input, shape index: {}]
  %s2 = inlined_call_operand.vmem [shape: f32[1,128], index: 2, kind: input, shape index: {}]
  %s3 = inlined_call_operand.vmem [shape: f32[128,64], index: 3, kind: input, shape index: {}]
  %s4 = inlined_call_operand.vmem [shape: f32[1,64], index: 4, kind: input, shape index: {}]
  %s5 = inlined_call_operand.vmem [shape: f32[64,4], index: 5, kind: input, shape index: {}]
  %s6 = inlined_call_operand.vmem [shape: f32[1,4], index: 6, kind: input, shape index: {}]
  %s7 = inlined_call_operand.vmem [shape: f32[8,4], index: 7, kind: output, shape index: {}]
  %s8 = sld [smem:[#allocation0]]
  $region38: #{qnetwork_forward.1} parent=0
    _
  %s10 = ssub.s32 1, %s8
  %s11 = scalar_select 0, %s10, %s8
  // Predicated region
  $region2: #{qnetwork_forward.1} parent=0 // pred_check
    _
  $region3: #{qnetwork_forward.1} parent=0 // pred_check_branch
    %13 = sbr.rel (0) target = $region5
  $region4: #{qnetwork_forward.1} parent=0 // pred_region
    _
  $region5: #{qnetwork_forward.1} parent=0 // pred_fallthru
    _
  // Predicated region
  $region6: #{qnetwork_forward.1} parent=0 // pred_check
    _
  $region7: #{qnetwork_forward.1} parent=0 // pred_check_branch
    %15 = sbr.rel (0) target = $region9
  $region8: #{qnetwork_forward.1} parent=0 // pred_region
    _
  $region9: #{qnetwork_forward.1} parent=0 // pred_fallthru
    _
  // Predicated region
  $region10: #{qnetwork_forward.1} parent=0 // pred_check
    _
  $region11: #{qnetwork_forward.1} parent=0 // pred_check_branch
    %17 = sbr.rel (0) target = $region13
  $region12: #{qnetwork_forward.1} parent=0 // pred_region
    _
  $region13: #{qnetwork_forward.1} parent=0 // pred_fallthru
    _
  // Predicated region
  $region14: #{qnetwork_forward.1} parent=0 // pred_check
    _
  $region15: #{qnetwork_forward.1} parent=0 // pred_check_branch
    %19 = sbr.rel (0) target = $region17
  $region16: #{qnetwork_forward.1} parent=0 // pred_region
    _
  $region17: #{qnetwork_forward.1} parent=0 // pred_fallthru
    _
  // Predicated region
  $region18: #{qnetwork_forward.1} parent=0 // pred_check
    _
  $region19: #{qnetwork_forward.1} parent=0 // pred_check_branch
    %21 = sbr.rel (0) target = $region21
  $region20: #{qnetwork_forward.1} parent=0 // pred_region
    _
  $region21: #{qnetwork_forward.1} parent=0 // pred_fallthru
    _
  // Predicated region
  $region22: #{qnetwork_forward.1} parent=0 // pred_check
    _
  $region23: #{qnetwork_forward.1} parent=0 // pred_check_branch
    %23 = sbr.rel (0) target = $region25
  $region24: #{qnetwork_forward.1} parent=0 // pred_region
    _
  $region25: #{qnetwork_forward.1} parent=0 // pred_fallthru
    _
  // Predicated region
  $region26: #{qnetwork_forward.1} parent=0 // pred_check
    _
  $region27: #{qnetwork_forward.1} parent=0 // pred_check_branch
    %25 = sbr.rel (0) target = $region29
  $region28: #{qnetwork_forward.1} parent=0 // pred_region
    _
  $region29: #{qnetwork_forward.1} parent=0 // pred_fallthru
    _
  %v26 = vld [vmem:[%s0] sm:$0xff]
  %v27 = vld [vmem:[%s1] sm:$0xff]
  %v28 = vld [vmem:[%s1 + $0x8] sm:$0xff]
  %v29 = vld [vmem:[%s2] sm:$0x1]
  %v31 = vperm.slane %v29, 0
  %vm33 = vcmask 130048
  %v35 = vsel %vm33, %v26, 0
  %37 = vmatpush.msra.mxu0 0.0
  %38 = vmatpush.msra.mxu0 0.0
  %39 = vmatpush.msra.mxu0 0.0
  %40 = vmatpush.msra.mxu0 0.0
  %41 = vmatpush.msra.mxu0 0.0
  %42 = vmatpush.msra.mxu0 0.0
  %43 = vmatpush.msra.mxu0 0.0
  %44 = vmatpush.msra.mxu0 0.0
  %45 = vmatpush.msra.mxu0 0.0
  %46 = vmatpush.msra.mxu0 0.0
  %47 = vmatpush.msra.mxu0 0.0
  %48 = vmatpush.msra.mxu0 0.0
  %49 = vmatpush.msra.mxu0 0.0
  %50 = vmatpush.msra.mxu0 0.0
  %51 = vmatpush.msra.mxu0 %v28
  %52 = vmatpush.msra.mxu0 %v27
  %53 = vmatmul.f32.gmra.mxu0 %v35
  %v54 = vpop.f32.mrf.mxu0
  %v55 = vadd.f32 %v31, %v54
  %56 = vdwg.mxu0
  %v57 = vmax.f32 %v55, 0.0
  %v58 = vld [vmem:[%s3] sm:$0xff]
  %v59 = vld [vmem:[%s3 + $0x8] sm:$0xff]
  %v60 = vld [vmem:[%s3 + $0x10] sm:$0xff]
  %v61 = vld [vmem:[%s3 + $0x18] sm:$0xff]
  %v62 = vld [vmem:[%s3 + $0x20] sm:$0xff]
  %v63 = vld [vmem:[%s3 + $0x28] sm:$0xff]
  %v64 = vld [vmem:[%s3 + $0x30] sm:$0xff]
  %v65 = vld [vmem:[%s3 + $0x38] sm:$0xff]
  %v66 = vld [vmem:[%s3 + $0x40] sm:$0xff]
  %v67 = vld [vmem:[%s3 + $0x48] sm:$0xff]
  %v68 = vld [vmem:[%s3 + $0x50] sm:$0xff]
  %v69 = vld [vmem:[%s3 + $0x58] sm:$0xff]
  %v70 = vld [vmem:[%s3 + $0x60] sm:$0xff]
  %v71 = vld [vmem:[%s3 + $0x68] sm:$0xff]
  %v72 = vld [vmem:[%s3 + $0x70] sm:$0xff]
  %v73 = vld [vmem:[%s3 + $0x78] sm:$0xff]
  %v74 = vld [vmem:[%s4] sm:$0x1]
  %v76 = vperm.slane %v74, 0
  %78 = vmatpush.msra.mxu0 %v73
  %79 = vmatpush.msra.mxu0 %v72
  %80 = vmatpush.msra.mxu0 %v71
  %81 = vmatpush.msra.mxu0 %v70
  %82 = vmatpush.msra.mxu0 %v69
  %83 = vmatpush.msra.mxu0 %v68
  %84 = vmatpush.msra.mxu0 %v67
  %85 = vmatpush.msra.mxu0 %v66
  %86 = vmatpush.msra.mxu0 %v65
  %87 = vmatpush.msra.mxu0 %v64
  %88 = vmatpush.msra.mxu0 %v63
  %89 = vmatpush.msra.mxu0 %v62
  %90 = vmatpush.msra.mxu0 %v61
  %91 = vmatpush.msra.mxu0 %v60
  %92 = vmatpush.msra.mxu0 %v59
  %93 = vmatpush.msra.mxu0 %v58
  %94 = vmatmul.f32.gmra.mxu0 %v57
  %v95 = vpop.f32.mrf.mxu0
  %v96 = vadd.f32 %v76, %v95
  %97 = vdwg.mxu0
  %v98 = vmax.f32 %v96, 0.0
  %v99 = vld [vmem:[%s5] sm:$0xff]
  %v100 = vld [vmem:[%s5 + $0x8] sm:$0xff]
  %v101 = vld [vmem:[%s5 + $0x10] sm:$0xff]
  %v102 = vld [vmem:[%s5 + $0x18] sm:$0xff]
  %v103 = vld [vmem:[%s5 + $0x20] sm:$0xff]
  %v104 = vld [vmem:[%s5 + $0x28] sm:$0xff]
  %v105 = vld [vmem:[%s5 + $0x30] sm:$0xff]
  %v106 = vld [vmem:[%s5 + $0x38] sm:$0xff]
  %v107 = vld [vmem:[%s6] sm:$0x1]
  %v109 = vperm.slane %v107, 0
  %vm111 = vcmask 523264
  %v113 = vsel %vm111, %v98, 0
  %115 = vmatpush.msra.mxu0 0.0
  %116 = vmatpush.msra.mxu0 0.0
  %117 = vmatpush.msra.mxu0 0.0
  %118 = vmatpush.msra.mxu0 0.0
  %119 = vmatpush.msra.mxu0 0.0
  %120 = vmatpush.msra.mxu0 0.0
  %121 = vmatpush.msra.mxu0 0.0
  %122 = vmatpush.msra.mxu0 0.0
  %123 = vmatpush.msra.mxu0 %v106
  %124 = vmatpush.msra.mxu0 %v105
  %125 = vmatpush.msra.mxu0 %v104
  %126 = vmatpush.msra.mxu0 %v103
  %127 = vmatpush.msra.mxu0 %v102
  %128 = vmatpush.msra.mxu0 %v101
  %129 = vmatpush.msra.mxu0 %v100
  %130 = vmatpush.msra.mxu0 %v99
  %131 = vmatmul.f32.gmra.mxu0 %v113
  %v132 = vpop.f32.mrf.mxu0
  %v133 = vadd.f32 %v109, %v132
  %134 = vdwg.mxu0
  %vm135 = vcmask 31744
  %136 = vst.msk [vmem:[%s7] sm:$0xff] %vm135, %v133
  // Predicated region
  $region30: #{qnetwork_forward.1} parent=0 // pred_check
    _
  $region31: #{qnetwork_forward.1} parent=0 // pred_check_branch
    %138 = sbr.rel (0) target = $region33
  $region32: #{qnetwork_forward.1} parent=0 // pred_region
    _
  $region33: #{qnetwork_forward.1} parent=0 // pred_fallthru
    _
  // Predicated region
  $region34: #{qnetwork_forward.1} parent=0 // pred_check
    _
  $region35: #{qnetwork_forward.1} parent=0 // pred_check_branch
    %140 = sbr.rel (0) target = $region37
  $region36: #{qnetwork_forward.1} parent=0 // pred_region
    _
  $region37: #{qnetwork_forward.1} parent=0 // pred_fallthru
    _

</llo_original>
